<compile_context>
chip_gen: v5e
topology: v5e:2x2
jax: 0.10.0
libtpu: 0.0.40
codegen_flags: <defaults>
</compile_context>

<pallas_src>
import jax
import jax.numpy as jnp
from jax.experimental import pallas as pl
from jax.experimental.pallas import tpu as pltpu


def _round_up(x, m):
    return (x + m - 1) // m * m


def _cdiv(a, b):
    return -(-a // b)


def _vmem_capacity_bytes():
    try:
        return int(pltpu.get_tpu_info().vmem_capacity_bytes)
    except Exception:
        return 64 << 20   # conservative fallback: v7x per-TensorCore VMEM


def _choose_batch_tiling(B, block_b):
    """Balanced batch tiles (minimal tail padding), >=2 tiles for v7x megacore."""
    n_tiles = _cdiv(B, block_b)
    TB = _round_up(_cdiv(B, n_tiles), 8)            # balanced, 8-row aligned
    if _round_up(B, TB) // TB < 2:
        # v7x has 2 TensorCores: split into two balanced tiles as long as each
        # tile stays >=128 rows; no-op for small batches (and harmless on v5e/v6e).
        TB2 = max(_round_up(_cdiv(B, 2), 8), 128)
        if TB2 < TB:
            TB = TB2
    Bp = _round_up(B, TB)
    return TB, Bp


def _mlp_kernel(x_ref, w1_ref, b1_ref, w2_ref, b2_ref, o_ref):
    """Resident-weight path: both (padded) weight matrices live in VMEM."""
    # x arrives already in the MXU dtype (bf16) -> no per-tile cast.
    h = jnp.dot(x_ref[...], w1_ref[...], preferred_element_type=jnp.float32)
    h = jnp.maximum(h + b1_ref[...], 0.0)           # bias + ReLU in f32 (VPU)
    y = jnp.dot(h.astype(w2_ref.dtype), w2_ref[...],
                preferred_element_type=jnp.float32)
    o_ref[...] = (y + b2_ref[...]).astype(o_ref.dtype)   # lane-dense full store


def _mlp_kernel_htiled(x_ref, w1_ref, b1_ref, w2_ref, b2_ref, o_ref, acc_ref):
    """Hidden-dim tiled fallback (large weights, e.g. v7x 64 MiB VMEM).

    y = sum_k relu(x @ W1[:, k] + b1[k]) @ W2[k, :]  + b2
    (ReLU is elementwise over hidden units, so hidden-tile contributions add.)
    """
    k = pl.program_id(1)

    @pl.when(k == 0)
    def _():
        acc_ref[...] = jnp.zeros_like(acc_ref)

    h = jnp.dot(x_ref[...], w1_ref[...], preferred_element_type=jnp.float32)
    h = jnp.maximum(h + b1_ref[...], 0.0)
    acc_ref[...] += jnp.dot(h.astype(w2_ref.dtype), w2_ref[...],
                            preferred_element_type=jnp.float32)

    @pl.when(k == pl.num_programs(1) - 1)
    def _():
        o_ref[...] = (acc_ref[...] + b2_ref[...]).astype(o_ref.dtype)


def food_recommender_forward(x, w1, b1, w2, b2, *,
                             block_b=512, mxu_dtype=jnp.bfloat16):
    """x: (B, input_size); w1: (input_size, hidden); b1: (1, hidden);
    w2: (hidden, input_size); b2: (1, input_size). Returns (B, input_size)."""
    B, input_size = x.shape
    hidden_size = w1.shape[1]
    w_bytes = jnp.dtype(mxu_dtype).itemsize
    out_dtype = x.dtype

    # Lane/MXU-friendly padded sizes (last dims multiples of 128).
    Fp = _round_up(input_size, 128)
    Hp = _round_up(hidden_size, 128)
    TB, Bp = _choose_batch_tiling(B, block_b)

    vmem_cap = _vmem_capacity_bytes()

    # Resident-weight path only if both (double-buffered) weight matrices fit
    # comfortably; otherwise tile the hidden contraction.
    resident_w_bytes = 2 * (Fp * Hp + Hp * Fp) * w_bytes
    use_resident = resident_w_bytes <= int(0.45 * vmem_cap)

    TH = Hp
    if not use_resident:
        budget = int(0.55 * vmem_cap)
        TH = min(Hp, 4096)
        while TH > 128:
            need = (4 * Fp * TH * w_bytes              # w1 + w2 blocks, dbl-buffered
                    + 2 * TB * Fp * (w_bytes + 4)      # x (bf16) / y (f32) buffers
                    + TB * Fp * 4 + TB * TH * 4        # accumulator + live h
                    + 2 * (TH + Fp) * 4)               # biases
            if need <= budget:
                break
            TH -= 128
        TH = max(TH, 128)
        Hp = _round_up(hidden_size, TH)                # Hp must tile by TH

    # Zero-pad (not garbage-pad) so padded columns contribute exactly 0 through
    # the ReLU and second matmul; skip pads that would be no-ops.
    if (Bp, Fp) == (B, input_size):
        xp = x.astype(mxu_dtype)
    else:
        xp = jnp.zeros((Bp, Fp), mxu_dtype).at[:B, :input_size].set(
            x.astype(mxu_dtype))
    if (Fp, Hp) == (input_size, hidden_size):
        w1p = w1.astype(mxu_dtype)
        w2p = w2.astype(mxu_dtype)
        b1p = b1.astype(jnp.float32)
        b2p = b2.astype(jnp.float32)
    else:
        w1p = jnp.zeros((Fp, Hp), mxu_dtype).at[:input_size, :hidden_size].set(
            w1.astype(mxu_dtype))
        w2p = jnp.zeros((Hp, Fp), mxu_dtype).at[:hidden_size, :input_size].set(
            w2.astype(mxu_dtype))
        b1p = jnp.zeros((1, Hp), jnp.float32).at[:, :hidden_size].set(
            b1.astype(jnp.float32))
        b2p = jnp.zeros((1, Fp), jnp.float32).at[:, :input_size].set(
            b2.astype(jnp.float32))

    flops = 2 * Bp * Fp * Hp + 2 * Bp * Hp * Fp
    bytes_accessed = (Bp * Fp * (w_bytes + 4)          # x in (bf16) + out (f32)
                      + (Fp * Hp + Hp * Fp) * w_bytes  # weights
                      + (Hp + Fp) * 4)                 # biases

    if use_resident:
        grid = (Bp // TB,)
        kernel = _mlp_kernel
        in_specs = [
            pl.BlockSpec((TB, Fp), lambda i: (i, 0)),   # x: batch-tiled, bf16
            pl.BlockSpec((Fp, Hp), lambda i: (0, 0)),   # w1: VMEM-resident
            pl.BlockSpec((1, Hp), lambda i: (0, 0)),    # b1: resident
            pl.BlockSpec((Hp, Fp), lambda i: (0, 0)),   # w2: VMEM-resident
            pl.BlockSpec((1, Fp), lambda i: (0, 0)),    # b2: resident
        ]
        out_specs = pl.BlockSpec((TB, Fp), lambda i: (i, 0))
        scratch_shapes = ()
        dim_sem = ("parallel",)
        vmem_need = (2 * TB * Fp * (w_bytes + 4)
                     + resident_w_bytes
                     + 2 * (Hp + Fp) * 4
                     + TB * Hp * 4 + TB * Fp * 4)
    else:
        grid = (Bp // TB, Hp // TH)
        kernel = _mlp_kernel_htiled
        in_specs = [
            pl.BlockSpec((TB, Fp), lambda i, k: (i, 0)),   # x: batch-tiled
            pl.BlockSpec((Fp, TH), lambda i, k: (0, k)),   # w1: hidden-tiled
            pl.BlockSpec((1, TH), lambda i, k: (0, k)),    # b1: hidden-tiled
            pl.BlockSpec((TH, Fp), lambda i, k: (k, 0)),   # w2: hidden-tiled
            pl.BlockSpec((1, Fp), lambda i, k: (0, 0)),    # b2: resident
        ]
        out_specs = pl.BlockSpec((TB, Fp), lambda i, k: (i, 0))
        scratch_shapes = (pltpu.VMEM((TB, Fp), jnp.float32),)
        dim_sem = ("parallel", "arbitrary")
        vmem_need = (4 * Fp * TH * w_bytes
                     + 2 * TB * Fp * (w_bytes + 4)
                     + TB * Fp * 4 + TB * TH * 4
                     + 2 * (TH + Fp) * 4)

    # Generation-aware clamp: ~96 MiB usable on v5e/v6e (128 MiB parts),
    # ~48 MiB on v7x (64 MiB per TensorCore).
    vmem_limit = int(min(max(int(1.25 * vmem_need), 16 << 20),
                         int(0.75 * vmem_cap)))

    out_padded = pl.pallas_call(
        kernel,
        out_shape=jax.ShapeDtypeStruct((Bp, Fp), out_dtype),
        grid=grid,
        in_specs=in_specs,
        out_specs=out_specs,
        scratch_shapes=scratch_shapes,
        compiler_params=pltpu.CompilerParams(
            dimension_semantics=dim_sem,
            vmem_limit_bytes=vmem_limit,
        ),
        cost_estimate=pl.CostEstimate(
            flops=flops, transcendentals=0, bytes_accessed=bytes_accessed),
    )(xp, w1p, b1p, w2p, b2p)

    if (Bp, Fp) == (B, input_size):
        return out_padded
    return out_padded[:B, :input_size]


def init_params(key, input_size, hidden_size):
    """Deterministic init mimicking nn.Linear's uniform(-1/sqrt(fan_in), 1/sqrt(fan_in))."""
    k1, k2, k3, k4 = jax.random.split(key, 4)
    bound1 = 1.0 / jnp.sqrt(input_size)
    bound2 = 1.0 / jnp.sqrt(hidden_size)
    # weights stored transposed relative to PyTorch: (in, out)
    w1 = jax.random.uniform(k1, (input_size, hidden_size), jnp.float32, -bound1, bound1)
    b1 = jax.random.uniform(k2, (1, hidden_size), jnp.float32, -bound1, bound1)
    w2 = jax.random.uniform(k3, (hidden_size, input_size), jnp.float32, -bound2, bound2)
    b2 = jax.random.uniform(k4, (1, input_size), jnp.float32, -bound2, bound2)
    return w1, b1, w2, b2


if __name__ == "__main__":
    key = jax.random.PRNGKey(0)
    batch = 8
    input_size = 16
    hidden_size = 32

    kx, kp = jax.random.split(key)
    x = jax.random.normal(kx, (batch, input_size), dtype=jnp.float32)
    w1, b1, w2, b2 = init_params(kp, input_size, hidden_size)

    # jit so the constant-shaped pad/cast wrapper ops are hoisted/fused by XLA.
    fwd = jax.jit(food_recommender_forward)
    out = jax.block_until_ready(fwd(x, w1, b1, w2, b2))

    # Reference in plain f32 JAX (same math as the PyTorch forward).
    ref = jnp.maximum(x @ w1 + b1, 0.0) @ w2 + b2
    assert out.shape == (batch, input_size)
    # bf16 MXU operands (x and weights) -> relaxed tolerance vs. pure-f32 ref.
    assert jnp.allclose(out, ref, atol=5e-2, rtol=5e-2), float(
        jnp.max(jnp.abs(out - ref)))

    print("KERNEL_OK")
</pallas_src>

<mosaic_0001>
module attributes {stable_mosaic.version = 11 : i64} {
  func.func @_mlp_kernel(%arg0: i32, %arg1: memref<8x128xbf16, #tpu.memory_space<vmem>>, %arg2: memref<128x128xbf16, #tpu.memory_space<vmem>>, %arg3: memref<1x128xf32, #tpu.memory_space<vmem>>, %arg4: memref<128x128xbf16, #tpu.memory_space<vmem>>, %arg5: memref<1x128xf32, #tpu.memory_space<vmem>>, %arg6: memref<8x128xf32, #tpu.memory_space<vmem>>) attributes {dimension_semantics = [#tpu.dimension_semantics<parallel>], iteration_bounds = array<i64: 1>, scalar_prefetch = 0 : i64, scratch_operands = 0 : i64, tpu.core_type = #tpu.core_type<tc>, window_params = [{transform_indices = @transform_0, window_bounds = array<i64: 8, 128>}, {pipeline_mode = #tpu.pipeline_mode<synchronous>, transform_indices = @transform_1, window_bounds = array<i64: 128, 128>}, {pipeline_mode = #tpu.pipeline_mode<synchronous>, transform_indices = @transform_2, window_bounds = array<i64: 1, 128>}, {pipeline_mode = #tpu.pipeline_mode<synchronous>, transform_indices = @transform_3, window_bounds = array<i64: 128, 128>}, {pipeline_mode = #tpu.pipeline_mode<synchronous>, transform_indices = @transform_4, window_bounds = array<i64: 1, 128>}, {transform_indices = @transform_5, window_bounds = array<i64: 8, 128>}]} {
    %c0 = arith.constant 0 : index
    %c0_0 = arith.constant 0 : index
    %0 = vector.load %arg1[%c0, %c0_0] : memref<8x128xbf16, #tpu.memory_space<vmem>>, vector<8x128xbf16>
    %c0_1 = arith.constant 0 : index
    %c0_2 = arith.constant 0 : index
    %1 = vector.load %arg2[%c0_1, %c0_2] : memref<128x128xbf16, #tpu.memory_space<vmem>>, vector<128x128xbf16>
    %cst = arith.constant dense<0.000000e+00> : vector<8x128xf32>
    %2 = tpu.matmul %0, %1, %cst {dimension_numbers = #tpu.dot_dimension_numbers<[1], [0], [0], [1], [0, 0, 1, 1], [], []>} : vector<8x128xbf16>, vector<128x128xbf16>, vector<8x128xf32> -> vector<8x128xf32>
    %c0_3 = arith.constant 0 : index
    %c0_4 = arith.constant 0 : index
    %3 = vector.load %arg3[%c0_3, %c0_4] : memref<1x128xf32, #tpu.memory_space<vmem>>, vector<1x128xf32>
    %4 = vector.broadcast %3 : vector<1x128xf32> to vector<8x128xf32>
    %5 = arith.addf %2, %4 : vector<8x128xf32>
    %cst_5 = arith.constant 0.000000e+00 : f32
    %6 = vector.broadcast %cst_5 : f32 to vector<8x128xf32>
    %7 = arith.maximumf %5, %6 : vector<8x128xf32>
    %8 = arith.truncf %7 : vector<8x128xf32> to vector<8x128xbf16>
    %c0_6 = arith.constant 0 : index
    %c0_7 = arith.constant 0 : index
    %9 = vector.load %arg4[%c0_6, %c0_7] : memref<128x128xbf16, #tpu.memory_space<vmem>>, vector<128x128xbf16>
    %cst_8 = arith.constant dense<0.000000e+00> : vector<8x128xf32>
    %10 = tpu.matmul %8, %9, %cst_8 {dimension_numbers = #tpu.dot_dimension_numbers<[1], [0], [0], [1], [0, 0, 1, 1], [], []>} : vector<8x128xbf16>, vector<128x128xbf16>, vector<8x128xf32> -> vector<8x128xf32>
    %c0_9 = arith.constant 0 : index
    %c0_10 = arith.constant 0 : index
    %11 = vector.load %arg5[%c0_9, %c0_10] : memref<1x128xf32, #tpu.memory_space<vmem>>, vector<1x128xf32>
    %12 = vector.broadcast %11 : vector<1x128xf32> to vector<8x128xf32>
    %13 = arith.addf %10, %12 : vector<8x128xf32>
    %c0_11 = arith.constant 0 : index
    %c0_12 = arith.constant 0 : index
    %14 = vector.load %arg6[%c0_11, %c0_12] : memref<8x128xf32, #tpu.memory_space<vmem>>, vector<8x128xf32>
    tpu.vector_store %arg6[%c0_11, %c0_12], %13 {strides = array<i32>} : memref<8x128xf32, #tpu.memory_space<vmem>>, vector<8x128xf32>,
    return
  }
  func.func @transform_0(%arg0: i32) -> (i32, i32) {
    %c0_i32 = arith.constant 0 : i32
    %c0_i32_0 = arith.constant 0 : i32
    return %arg0, %c0_i32 : i32, i32
  }
  func.func @transform_1(%arg0: i32) -> (i32, i32) {
    %c0_i32 = arith.constant 0 : i32
    %c0_i32_0 = arith.constant 0 : i32
    %c0_i32_1 = arith.constant 0 : i32
    return %c0_i32, %c0_i32_0 : i32, i32
  }
  func.func @transform_2(%arg0: i32) -> (i32, i32) {
    %c0_i32 = arith.constant 0 : i32
    %c0_i32_0 = arith.constant 0 : i32
    %c0_i32_1 = arith.constant 0 : i32
    return %c0_i32, %c0_i32_0 : i32, i32
  }
  func.func @transform_3(%arg0: i32) -> (i32, i32) {
    %c0_i32 = arith.constant 0 : i32
    %c0_i32_0 = arith.constant 0 : i32
    %c0_i32_1 = arith.constant 0 : i32
    return %c0_i32, %c0_i32_0 : i32, i32
  }
  func.func @transform_4(%arg0: i32) -> (i32, i32) {
    %c0_i32 = arith.constant 0 : i32
    %c0_i32_0 = arith.constant 0 : i32
    %c0_i32_1 = arith.constant 0 : i32
    return %c0_i32, %c0_i32_0 : i32, i32
  }
  func.func @transform_5(%arg0: i32) -> (i32, i32) {
    %c0_i32 = arith.constant 0 : i32
    %c0_i32_0 = arith.constant 0 : i32
    return %arg0, %c0_i32 : i32, i32
  }
}

</mosaic_0001>

<llo_original>
// kernel: food_recommender_forward.1
$region0: #{food_recommender_forward.1}
  #allocation0 [shape = 'u32[]', space=smem, size = 0x4, offset = 0x4, fixed_abs, tag = 'smem constant byte address 0x4 - core index']
  #allocation1 [shape = 'u32[72,128]{1,0:T(1,128)}', space=vmem, size = 0x9000, scoped, tag = 'internal scratch']
  %s0 = inlined_call_operand.vmem [shape: bf16[8,128], index: 0, kind: input, shape index: {}]
  %s1 = inlined_call_operand.vmem [shape: bf16[128,128], index: 1, kind: input, shape index: {}]
  %s2 = inlined_call_operand.vmem [shape: f32[1,128], index: 2, kind: input, shape index: {}]
  %s3 = inlined_call_operand.vmem [shape: bf16[128,128], index: 3, kind: input, shape index: {}]
  %s4 = inlined_call_operand.vmem [shape: f32[1,128], index: 4, kind: input, shape index: {}]
  %s5 = inlined_call_operand.hbm [shape: f32[8,128], index: 5, kind: output, shape index: {}]
  %s6 = sld [smem:[#allocation0]]
  $region30: #{food_recommender_forward.1} parent=0
    _
  %s8 = ssub.s32 1, %s6
  %s9 = scalar_select 0, %s8, %s6
  $region1: #{food_recommender_forward.1} parent=0
    #allocation2 [shape = 'u8[4096]{0}', space=vmem, size = 0x1000, scoped, tag = 'output window, operand 0, single buffered']
    #allocation3 [shape = 's32[1]{0}', space=sflag, size = 0x4, scoped, tag = 'scoped memory for food_recommender_forward.1']
    %10 = vsyncpa [#allocation3], 0
    // Predicated region
    $region2: #{food_recommender_forward.1} parent=1 // pred_check
      _
    $region3: #{food_recommender_forward.1} parent=1 // pred_check_branch
      %12 = sbr.rel (0) target = $region5
    $region4: #{food_recommender_forward.1} parent=1 // pred_region
      _
    $region5: #{food_recommender_forward.1} parent=1 // pred_fallthru
      _
    // Predicated region
    $region6: #{food_recommender_forward.1} parent=1 // pred_check
      _
    $region7: #{food_recommender_forward.1} parent=1 // pred_check_branch
      %14 = sbr.rel (0) target = $region9
    $region8: #{food_recommender_forward.1} parent=1 // pred_region
      _
    $region9: #{food_recommender_forward.1} parent=1 // pred_fallthru
      _
    // Predicated region
    $region10: #{food_recommender_forward.1} parent=1 // pred_check
      _
    $region11: #{food_recommender_forward.1} parent=1 // pred_check_branch
      %16 = sbr.rel (0) target = $region13
    $region12: #{food_recommender_forward.1} parent=1 // pred_region
      _
    $region13: #{food_recommender_forward.1} parent=1 // pred_fallthru
      _
    // Predicated region
    $region14: #{food_recommender_forward.1} parent=1 // pred_check
      _
    $region15: #{food_recommender_forward.1} parent=1 // pred_check_branch
      %18 = sbr.rel (0) target = $region17
    $region16: #{food_recommender_forward.1} parent=1 // pred_region
      _
    $region17: #{food_recommender_forward.1} parent=1 // pred_fallthru
      _
    // Predicated region
    $region18: #{food_recommender_forward.1} parent=1 // pred_check
      _
    $region19: #{food_recommender_forward.1} parent=1 // pred_check_branch
      %20 = sbr.rel (0) target = $region21
    $region20: #{food_recommender_forward.1} parent=1 // pred_region
      _
    $region21: #{food_recommender_forward.1} parent=1 // pred_fallthru
      _
    %v21 = vld [vmem:[%s0] sm:$0xf]
    %v22 = vld [vmem:[%s1] sm:$0xf]
    %v23 = vld [vmem:[%s1 + $0x4] sm:$0xf]
    %v24 = vld [vmem:[%s1 + $0x8] sm:$0xf]
    %v25 = vld [vmem:[%s1 + $0xc] sm:$0xf]
    %v26 = vld [vmem:[%s1 + $0x10] sm:$0xf]
    %v27 = vld [vmem:[%s1 + $0x14] sm:$0xf]
    %v28 = vld [vmem:[%s1 + $0x18] sm:$0xf]
    %v29 = vld [vmem:[%s1 + $0x1c] sm:$0xf]
    %v30 = vld [vmem:[%s1 + $0x20] sm:$0xf]
    %v31 = vld [vmem:[%s1 + $0x24] sm:$0xf]
    %v32 = vld [vmem:[%s1 + $0x28] sm:$0xf]
    %v33 = vld [vmem:[%s1 + $0x2c] sm:$0xf]
    %v34 = vld [vmem:[%s1 + $0x30] sm:$0xf]
    %v35 = vld [vmem:[%s1 + $0x34] sm:$0xf]
    %v36 = vld [vmem:[%s1 + $0x38] sm:$0xf]
    %v37 = vld [vmem:[%s1 + $0x3c] sm:$0xf]
    %v38 = vld [vmem:[%s2] sm:$0x1]
    %v40 = vperm.slane %v38, 0
    %v58 = vunpack.c.l.b16 %v22
    %v59 = vunpack.c.l.b16 %v23
    %v60 = vunpack.c.l.b16 %v24
    %v61 = vunpack.c.l.b16 %v25
    %v62 = vunpack.c.l.b16 %v26
    %v63 = vunpack.c.l.b16 %v27
    %v64 = vunpack.c.l.b16 %v28
    %v65 = vunpack.c.l.b16 %v29
    %v66 = vunpack.c.l.b16 %v30
    %v67 = vunpack.c.l.b16 %v31
    %v68 = vunpack.c.l.b16 %v32
    %v69 = vunpack.c.l.b16 %v33
    %v70 = vunpack.c.l.b16 %v34
    %v71 = vunpack.c.l.b16 %v35
    %v72 = vunpack.c.l.b16 %v36
    %v73 = vunpack.c.l.b16 %v37
    %v74 = vpack.c.b16 %v59, %v58
    %v75 = vpack.c.b16 %v61, %v60
    %v76 = vpack.c.b16 %v63, %v62
    %v77 = vpack.c.b16 %v65, %v64
    %v78 = vpack.c.b16 %v67, %v66
    %v79 = vpack.c.b16 %v69, %v68
    %v80 = vpack.c.b16 %v71, %v70
    %v81 = vpack.c.b16 %v73, %v72
    %90 = vmatpush.bf16.msra.mxu0 %v81
    %91 = vmatpush.bf16.msra.mxu0 %v80
    %92 = vmatpush.bf16.msra.mxu0 %v79
    %93 = vmatpush.bf16.msra.mxu0 %v78
    %94 = vmatpush.bf16.msra.mxu0 %v77
    %95 = vmatpush.bf16.msra.mxu0 %v76
    %96 = vmatpush.bf16.msra.mxu0 %v75
    %97 = vmatpush.bf16.msra.mxu0 %v74
    %98 = vmatmul.bf16.gmra.mxu0 %v21
    %v99 = vpop.f32.mrf.mxu0
    %v100 = vadd.f32 %v40, %v99
    %v101 = vpop.f32.mrf.mxu0
    %102 = vdwg.mxu0
    %v103 = vmax.f32 %v100, 0.0
    %v104 = vpack.c.bf16 %v103, %v103
    %v105 = vld [vmem:[%s3] sm:$0xf]
    %v106 = vld [vmem:[%s3 + $0x4] sm:$0xf]
    %v107 = vld [vmem:[%s3 + $0x8] sm:$0xf]
    %v108 = vld [vmem:[%s3 + $0xc] sm:$0xf]
    %v109 = vld [vmem:[%s3 + $0x10] sm:$0xf]
    %v110 = vld [vmem:[%s3 + $0x14] sm:$0xf]
    %v111 = vld [vmem:[%s3 + $0x18] sm:$0xf]
    %v112 = vld [vmem:[%s3 + $0x1c] sm:$0xf]
    %v113 = vld [vmem:[%s3 + $0x20] sm:$0xf]
    %v114 = vld [vmem:[%s3 + $0x24] sm:$0xf]
    %v115 = vld [vmem:[%s3 + $0x28] sm:$0xf]
    %v116 = vld [vmem:[%s3 + $0x2c] sm:$0xf]
    %v117 = vld [vmem:[%s3 + $0x30] sm:$0xf]
    %v118 = vld [vmem:[%s3 + $0x34] sm:$0xf]
    %v119 = vld [vmem:[%s3 + $0x38] sm:$0xf]
    %v120 = vld [vmem:[%s3 + $0x3c] sm:$0xf]
    %v121 = vld [vmem:[%s4] sm:$0x1]
    %v123 = vperm.slane %v121, 0
    %v141 = vunpack.c.l.b16 %v105
    %v142 = vunpack.c.l.b16 %v106
    %v143 = vunpack.c.l.b16 %v107
    %v144 = vunpack.c.l.b16 %v108
    %v145 = vunpack.c.l.b16 %v109
    %v146 = vunpack.c.l.b16 %v110
    %v147 = vunpack.c.l.b16 %v111
    %v148 = vunpack.c.l.b16 %v112
    %v149 = vunpack.c.l.b16 %v113
    %v150 = vunpack.c.l.b16 %v114
    %v151 = vunpack.c.l.b16 %v115
    %v152 = vunpack.c.l.b16 %v116
    %v153 = vunpack.c.l.b16 %v117
    %v154 = vunpack.c.l.b16 %v118
    %v155 = vunpack.c.l.b16 %v119
    %v156 = vunpack.c.l.b16 %v120
    %v157 = vpack.c.b16 %v142, %v141
    %v158 = vpack.c.b16 %v144, %v143
    %v159 = vpack.c.b16 %v146, %v145
    %v160 = vpack.c.b16 %v148, %v147
    %v161 = vpack.c.b16 %v150, %v149
    %v162 = vpack.c.b16 %v152, %v151
    %v163 = vpack.c.b16 %v154, %v153
    %v164 = vpack.c.b16 %v156, %v155
    %173 = vmatpush.bf16.msra.mxu0 %v164
    %174 = vmatpush.bf16.msra.mxu0 %v163
    %175 = vmatpush.bf16.msra.mxu0 %v162
    %176 = vmatpush.bf16.msra.mxu0 %v161
    %177 = vmatpush.bf16.msra.mxu0 %v160
    %178 = vmatpush.bf16.msra.mxu0 %v159
    %179 = vmatpush.bf16.msra.mxu0 %v158
    %180 = vmatpush.bf16.msra.mxu0 %v157
    %181 = vmatmul.bf16.gmra.mxu0 %v104
    %v182 = vpop.f32.mrf.mxu0
    %v183 = vadd.f32 %v123, %v182
    %v184 = vpop.f32.mrf.mxu0
    %185 = vdwg.mxu0
    %186 = vst [vmem:[#allocation2] sm:$0xff] %v183
    // Predicated region
    $region22: #{food_recommender_forward.1} parent=1 // pred_check
      _
    $region23: #{food_recommender_forward.1} parent=1 // pred_check_branch
      %188 = sbr.rel (0) target = $region25
    $region24: #{food_recommender_forward.1} parent=1 // pred_region
      %190 = vsyncadd [#allocation3], 0
      %s192 = sshll.u32 [#allocation2], 4
      %s193 = int_to_ptr.vmem [resolvable:$true] %s192
      %s194 = sshll.u32 %s5, 4
      %s195 = int_to_ptr.hbm [resolvable:$true] %s194
      %197 = dma.vmem_to_hbm [thread:$0]  %s193, 128, %s195, [#allocation3]
    $region25: #{food_recommender_forward.1} parent=1 // pred_fallthru
      _
    // Predicated region
    $region26: #{food_recommender_forward.1} parent=1 // pred_check
      _
    $region27: #{food_recommender_forward.1} parent=1 // pred_check_branch
      %199 = sbr.rel (0) target = $region29
    $region28: #{food_recommender_forward.1} parent=1 // pred_region
      %201 = dma.done [#allocation3], 128
    $region29: #{food_recommender_forward.1} parent=1 // pred_fallthru
      _
    %202 = vsyncpa [#allocation3], 1

</llo_original>
